<compile_context>
chip_gen: v7x
topology: tpu7x:2x2x1
jax: 0.10.0
libtpu: 0.0.40
codegen_flags: <defaults>
</compile_context>

<pallas_src>
import functools

import jax
import jax.numpy as jnp
from jax.experimental import pallas as pl
from jax.experimental.pallas import tpu as pltpu


def _round_up(x, m):
    return (x + m - 1) // m * m


def policy_net_kernel(x_ref, w1_ref, b1_ref, w2_ref, b2_ref, w3_ref, b3_ref,
                      out_ref, xpad_ref):
    """Fused 3-layer MLP for one batch tile.

    x_ref   : (TB, in_dim)  f32   streamed batch tile (unpadded lanes)
    w*_ref  : bf16 weights, zero-padded per-dim to multiples of 128 (resident)
    b*_ref  : (1, P) f32 biases (resident)
    out_ref : (TB, P_out)   bf16
    xpad_ref: (TB, P_in)    f32 VMEM scratch used to lane-pad the input
    """
    tb, in_dim = x_ref.shape
    p_in = xpad_ref.shape[1]

    # Lane-pad the input inside VMEM (avoids materializing a padded copy in
    # HBM).  Zero padding is exact under the zero-padded weights.
    xpad_ref[:, :in_dim] = x_ref[...]
    if p_in > in_dim:
        xpad_ref[:, in_dim:] = jnp.zeros((tb, p_in - in_dim), jnp.float32)
    x = xpad_ref[...].astype(jnp.bfloat16)

    # bf16 MXU inputs, f32 accumulation; bias add / ReLU stay in f32.
    h = jnp.dot(x, w1_ref[...], preferred_element_type=jnp.float32)
    h = jnp.maximum(h + b1_ref[...], 0.0)
    h = jnp.dot(h.astype(jnp.bfloat16), w2_ref[...],
                preferred_element_type=jnp.float32)
    h = jnp.maximum(h + b2_ref[...], 0.0)
    h = jnp.dot(h.astype(jnp.bfloat16), w3_ref[...],
                preferred_element_type=jnp.float32)
    out_ref[...] = (h + b3_ref[...]).astype(out_ref.dtype)


def pack_params(params):
    """Zero-pad each feature dim independently to a multiple of 128 and cast
    weights to bf16 / biases to f32.  Called ONCE, outside the jitted forward,
    so repacking is never paid per step."""
    w1, b1, w2, b2, w3, b3 = (params["w1"], params["b1"], params["w2"],
                              params["b2"], params["w3"], params["b3"])
    in_dim, hid = w1.shape
    out_dim = w3.shape[1]
    p_in = _round_up(in_dim, 128)
    p_hid = _round_up(hid, 128)
    p_out = _round_up(out_dim, 128)

    def pad_w(w, rows, cols):
        return jnp.pad(
            w, ((0, rows - w.shape[0]), (0, cols - w.shape[1]))
        ).astype(jnp.bfloat16)

    def pad_b(b, cols):
        b = b.reshape(1, -1)
        return jnp.pad(b, ((0, 0), (0, cols - b.shape[1]))).astype(jnp.float32)

    packed = (pad_w(w1, p_in, p_hid), pad_b(b1, p_hid),
              pad_w(w2, p_hid, p_hid), pad_b(b2, p_hid),
              pad_w(w3, p_hid, p_out), pad_b(b3, p_out))
    dims = dict(in_dim=in_dim, hidden_dim=hid, out_dim=out_dim,
                p_in=p_in, p_hid=p_hid, p_out=p_out)
    return packed, dims


@functools.partial(jax.jit, static_argnames=("out_dim", "block_b"))
def _policy_net_forward(x, w1p, b1p, w2p, b2p, w3p, b3p, *, out_dim, block_b):
    B, in_dim = x.shape
    p_in, p_hid = w1p.shape
    p_out = w3p.shape[1]

    # Batch tile: multiple of 8 sublanes; prefer >= 2 grid steps so both v7x
    # TensorCores get work under dimension_semantics=("parallel",).
    tb_cap = _round_up(B, 8)
    TB = min(block_b, tb_cap)
    if tb_cap >= 16:
        TB = min(TB, _round_up((tb_cap + 1) // 2, 8))
    Bp = _round_up(B, TB)
    if Bp != B:
        x = jnp.pad(x, ((0, Bp - B), (0, 0)))

    flops = 2 * Bp * (p_in * p_hid + p_hid * p_hid + p_hid * p_out)
    bytes_accessed = (Bp * in_dim * 4 + Bp * p_out * 2
                      + (p_in * p_hid + p_hid * p_hid + p_hid * p_out) * 2
                      + (2 * p_hid + p_out) * 4)

    out_padded = pl.pallas_call(
        policy_net_kernel,
        out_shape=jax.ShapeDtypeStruct((Bp, p_out), jnp.bfloat16),
        grid=(Bp // TB,),
        in_specs=[
            pl.BlockSpec((TB, in_dim), lambda i: (i, 0)),    # streamed batch
            pl.BlockSpec((p_in, p_hid), lambda i: (0, 0)),   # resident w1
            pl.BlockSpec((1, p_hid), lambda i: (0, 0)),      # resident b1
            pl.BlockSpec((p_hid, p_hid), lambda i: (0, 0)),  # resident w2
            pl.BlockSpec((1, p_hid), lambda i: (0, 0)),      # resident b2
            pl.BlockSpec((p_hid, p_out), lambda i: (0, 0)),  # resident w3
            pl.BlockSpec((1, p_out), lambda i: (0, 0)),      # resident b3
        ],
        out_specs=pl.BlockSpec((TB, p_out), lambda i: (i, 0)),
        scratch_shapes=[pltpu.VMEM((TB, p_in), jnp.float32)],
        compiler_params=pltpu.CompilerParams(
            dimension_semantics=("parallel",)),
        cost_estimate=pl.CostEstimate(
            flops=flops, transcendentals=0, bytes_accessed=bytes_accessed),
    )(x, w1p, b1p, w2p, b2p, w3p, b3p)

    # Slice away batch/lane padding; widen bf16 logits to f32 at the boundary.
    return out_padded[:B, :out_dim].astype(jnp.float32)


def make_policy_net_forward(params, *, block_b=1024):
    """Pack parameters once; return a jitted forward(x) -> [B, out_dim] f32."""
    packed, dims = pack_params(params)
    out_dim = dims["out_dim"]

    def forward(x):
        return _policy_net_forward(x, *packed, out_dim=out_dim,
                                   block_b=block_b)
    return forward


def init_params(key, input_dim, output_dim, hidden_dim):
    """Deterministic init mimicking nn.Linear's uniform(-1/sqrt(fan_in), +)."""
    ks = jax.random.split(key, 6)

    def linear(kw, kb, fan_in, fan_out):
        bound = 1.0 / jnp.sqrt(fan_in)
        # stored as [in, out] (transpose of PyTorch's [out, in])
        w = jax.random.uniform(kw, (fan_in, fan_out), jnp.float32, -bound, bound)
        b = jax.random.uniform(kb, (1, fan_out), jnp.float32, -bound, bound)
        return w, b

    w1, b1 = linear(ks[0], ks[1], input_dim, hidden_dim)
    w2, b2 = linear(ks[2], ks[3], hidden_dim, hidden_dim)
    w3, b3 = linear(ks[4], ks[5], hidden_dim, output_dim)
    return {"w1": w1, "b1": b1, "w2": w2, "b2": b2, "w3": w3, "b3": b3}


if __name__ == "__main__":
    key = jax.random.PRNGKey(0)
    k_param, k_x = jax.random.split(key)

    batch = 8
    input_dim = 16
    hidden_dim = 32
    output_dim = 4

    params = init_params(k_param, input_dim, output_dim, hidden_dim)
    x = jax.random.normal(k_x, (batch, input_dim), jnp.float32)

    forward = make_policy_net_forward(params)
    logits = forward(x)
    jax.block_until_ready(logits)
    assert logits.shape == (batch, output_dim)

    # Reference mirroring the kernel arithmetic (bf16 MXU inputs, f32
    # accumulation, f32 bias/ReLU, bf16 output store).
    w1b = params["w1"].astype(jnp.bfloat16)
    w2b = params["w2"].astype(jnp.bfloat16)
    w3b = params["w3"].astype(jnp.bfloat16)
    h1 = jnp.maximum(
        jnp.dot(x.astype(jnp.bfloat16), w1b,
                preferred_element_type=jnp.float32) + params["b1"], 0.0)
    h2 = jnp.maximum(
        jnp.dot(h1.astype(jnp.bfloat16), w2b,
                preferred_element_type=jnp.float32) + params["b2"], 0.0)
    ref = (jnp.dot(h2.astype(jnp.bfloat16), w3b,
                   preferred_element_type=jnp.float32) + params["b3"])
    ref = ref.astype(jnp.bfloat16).astype(jnp.float32)
    assert jnp.allclose(logits, ref, atol=1e-2, rtol=1e-2)

    # Coarse check against the full-f32 (PyTorch-semantics) reference; bf16
    # MXU inputs / bf16 output only cost ~1e-2 absolute at these shapes.
    # TODO(synk): exact f32 Linear parity would require dropping the bf16 cast.
    h1f = jnp.maximum(x @ params["w1"] + params["b1"], 0.0)
    h2f = jnp.maximum(h1f @ params["w2"] + params["b2"], 0.0)
    reff = h2f @ params["w3"] + params["b3"]
    assert jnp.allclose(logits, reff, atol=5e-2, rtol=5e-2)

    print("KERNEL_OK")
</pallas_src>

<mosaic_0001>
module attributes {stable_mosaic.version = 11 : i64} {
  func.func @policy_net_kernel(%arg0: i32, %arg1: memref<8x16xf32, #tpu.memory_space<vmem>>, %arg2: memref<128x128xbf16, #tpu.memory_space<vmem>>, %arg3: memref<1x128xf32, #tpu.memory_space<vmem>>, %arg4: memref<128x128xbf16, #tpu.memory_space<vmem>>, %arg5: memref<1x128xf32, #tpu.memory_space<vmem>>, %arg6: memref<128x128xbf16, #tpu.memory_space<vmem>>, %arg7: memref<1x128xf32, #tpu.memory_space<vmem>>, %arg8: memref<8x128xbf16, #tpu.memory_space<vmem>>, %arg9: memref<8x128xf32, #tpu.memory_space<vmem>>) attributes {dimension_semantics = [#tpu.dimension_semantics<parallel>], iteration_bounds = array<i64: 1>, scalar_prefetch = 0 : i64, scratch_operands = 1 : i64, tpu.core_type = #tpu.core_type<tc>, window_params = [{transform_indices = @transform_0, window_bounds = array<i64: 8, 16>}, {pipeline_mode = #tpu.pipeline_mode<synchronous>, transform_indices = @transform_1, window_bounds = array<i64: 128, 128>}, {pipeline_mode = #tpu.pipeline_mode<synchronous>, transform_indices = @transform_2, window_bounds = array<i64: 1, 128>}, {pipeline_mode = #tpu.pipeline_mode<synchronous>, transform_indices = @transform_3, window_bounds = array<i64: 128, 128>}, {pipeline_mode = #tpu.pipeline_mode<synchronous>, transform_indices = @transform_4, window_bounds = array<i64: 1, 128>}, {pipeline_mode = #tpu.pipeline_mode<synchronous>, transform_indices = @transform_5, window_bounds = array<i64: 128, 128>}, {pipeline_mode = #tpu.pipeline_mode<synchronous>, transform_indices = @transform_6, window_bounds = array<i64: 1, 128>}, {transform_indices = @transform_7, window_bounds = array<i64: 8, 128>}]} {
    %c0 = arith.constant 0 : index
    %c0_0 = arith.constant 0 : index
    %0 = vector.load %arg1[%c0, %c0_0] : memref<8x16xf32, #tpu.memory_space<vmem>>, vector<8x16xf32>
    %c0_1 = arith.constant 0 : index
    %c0_2 = arith.constant 0 : index
    %1 = vector.load %arg9[%c0_1, %c0_2] : memref<8x128xf32, #tpu.memory_space<vmem>>, vector<8x16xf32>
    tpu.vector_store %arg9[%c0_1, %c0_2], %0 {strides = array<i32>} : memref<8x128xf32, #tpu.memory_space<vmem>>, vector<8x16xf32>,
    %cst = arith.constant 0.000000e+00 : f32
    %2 = vector.broadcast %cst : f32 to vector<8x112xf32>
    %c0_3 = arith.constant 0 : index
    %c16 = arith.constant 16 : index
    %3 = vector.load %arg9[%c0_3, %c16] : memref<8x128xf32, #tpu.memory_space<vmem>>, vector<8x112xf32>
    tpu.vector_store %arg9[%c0_3, %c16], %2 {strides = array<i32>} : memref<8x128xf32, #tpu.memory_space<vmem>>, vector<8x112xf32>,
    %c0_4 = arith.constant 0 : index
    %c0_5 = arith.constant 0 : index
    %4 = vector.load %arg9[%c0_4, %c0_5] : memref<8x128xf32, #tpu.memory_space<vmem>>, vector<8x128xf32>
    %5 = arith.truncf %4 : vector<8x128xf32> to vector<8x128xbf16>
    %c0_6 = arith.constant 0 : index
    %c0_7 = arith.constant 0 : index
    %6 = vector.load %arg2[%c0_6, %c0_7] : memref<128x128xbf16, #tpu.memory_space<vmem>>, vector<128x128xbf16>
    %cst_8 = arith.constant dense<0.000000e+00> : vector<8x128xf32>
    %7 = tpu.matmul %5, %6, %cst_8 {dimension_numbers = #tpu.dot_dimension_numbers<[1], [0], [0], [1], [0, 0, 1, 1], [], []>} : vector<8x128xbf16>, vector<128x128xbf16>, vector<8x128xf32> -> vector<8x128xf32>
    %c0_9 = arith.constant 0 : index
    %c0_10 = arith.constant 0 : index
    %8 = vector.load %arg3[%c0_9, %c0_10] : memref<1x128xf32, #tpu.memory_space<vmem>>, vector<1x128xf32>
    %9 = vector.broadcast %8 : vector<1x128xf32> to vector<8x128xf32>
    %10 = arith.addf %7, %9 : vector<8x128xf32>
    %cst_11 = arith.constant 0.000000e+00 : f32
    %11 = vector.broadcast %cst_11 : f32 to vector<8x128xf32>
    %12 = arith.maximumf %10, %11 : vector<8x128xf32>
    %13 = arith.truncf %12 : vector<8x128xf32> to vector<8x128xbf16>
    %c0_12 = arith.constant 0 : index
    %c0_13 = arith.constant 0 : index
    %14 = vector.load %arg4[%c0_12, %c0_13] : memref<128x128xbf16, #tpu.memory_space<vmem>>, vector<128x128xbf16>
    %cst_14 = arith.constant dense<0.000000e+00> : vector<8x128xf32>
    %15 = tpu.matmul %13, %14, %cst_14 {dimension_numbers = #tpu.dot_dimension_numbers<[1], [0], [0], [1], [0, 0, 1, 1], [], []>} : vector<8x128xbf16>, vector<128x128xbf16>, vector<8x128xf32> -> vector<8x128xf32>
    %c0_15 = arith.constant 0 : index
    %c0_16 = arith.constant 0 : index
    %16 = vector.load %arg5[%c0_15, %c0_16] : memref<1x128xf32, #tpu.memory_space<vmem>>, vector<1x128xf32>
    %17 = vector.broadcast %16 : vector<1x128xf32> to vector<8x128xf32>
    %18 = arith.addf %15, %17 : vector<8x128xf32>
    %cst_17 = arith.constant 0.000000e+00 : f32
    %19 = vector.broadcast %cst_17 : f32 to vector<8x128xf32>
    %20 = arith.maximumf %18, %19 : vector<8x128xf32>
    %21 = arith.truncf %20 : vector<8x128xf32> to vector<8x128xbf16>
    %c0_18 = arith.constant 0 : index
    %c0_19 = arith.constant 0 : index
    %22 = vector.load %arg6[%c0_18, %c0_19] : memref<128x128xbf16, #tpu.memory_space<vmem>>, vector<128x128xbf16>
    %cst_20 = arith.constant dense<0.000000e+00> : vector<8x128xf32>
    %23 = tpu.matmul %21, %22, %cst_20 {dimension_numbers = #tpu.dot_dimension_numbers<[1], [0], [0], [1], [0, 0, 1, 1], [], []>} : vector<8x128xbf16>, vector<128x128xbf16>, vector<8x128xf32> -> vector<8x128xf32>
    %c0_21 = arith.constant 0 : index
    %c0_22 = arith.constant 0 : index
    %24 = vector.load %arg7[%c0_21, %c0_22] : memref<1x128xf32, #tpu.memory_space<vmem>>, vector<1x128xf32>
    %25 = vector.broadcast %24 : vector<1x128xf32> to vector<8x128xf32>
    %26 = arith.addf %23, %25 : vector<8x128xf32>
    %27 = arith.truncf %26 : vector<8x128xf32> to vector<8x128xbf16>
    %c0_23 = arith.constant 0 : index
    %c0_24 = arith.constant 0 : index
    %28 = vector.load %arg8[%c0_23, %c0_24] : memref<8x128xbf16, #tpu.memory_space<vmem>>, vector<8x128xbf16>
    tpu.vector_store %arg8[%c0_23, %c0_24], %27 {strides = array<i32>} : memref<8x128xbf16, #tpu.memory_space<vmem>>, vector<8x128xbf16>,
    return
  }
  func.func @transform_0(%arg0: i32) -> (i32, i32) {
    %c0_i32 = arith.constant 0 : i32
    %c0_i32_0 = arith.constant 0 : i32
    return %arg0, %c0_i32 : i32, i32
  }
  func.func @transform_1(%arg0: i32) -> (i32, i32) {
    %c0_i32 = arith.constant 0 : i32
    %c0_i32_0 = arith.constant 0 : i32
    %c0_i32_1 = arith.constant 0 : i32
    return %c0_i32, %c0_i32_0 : i32, i32
  }
  func.func @transform_2(%arg0: i32) -> (i32, i32) {
    %c0_i32 = arith.constant 0 : i32
    %c0_i32_0 = arith.constant 0 : i32
    %c0_i32_1 = arith.constant 0 : i32
    return %c0_i32, %c0_i32_0 : i32, i32
  }
  func.func @transform_3(%arg0: i32) -> (i32, i32) {
    %c0_i32 = arith.constant 0 : i32
    %c0_i32_0 = arith.constant 0 : i32
    %c0_i32_1 = arith.constant 0 : i32
    return %c0_i32, %c0_i32_0 : i32, i32
  }
  func.func @transform_4(%arg0: i32) -> (i32, i32) {
    %c0_i32 = arith.constant 0 : i32
    %c0_i32_0 = arith.constant 0 : i32
    %c0_i32_1 = arith.constant 0 : i32
    return %c0_i32, %c0_i32_0 : i32, i32
  }
  func.func @transform_5(%arg0: i32) -> (i32, i32) {
    %c0_i32 = arith.constant 0 : i32
    %c0_i32_0 = arith.constant 0 : i32
    %c0_i32_1 = arith.constant 0 : i32
    return %c0_i32, %c0_i32_0 : i32, i32
  }
  func.func @transform_6(%arg0: i32) -> (i32, i32) {
    %c0_i32 = arith.constant 0 : i32
    %c0_i32_0 = arith.constant 0 : i32
    %c0_i32_1 = arith.constant 0 : i32
    return %c0_i32, %c0_i32_0 : i32, i32
  }
  func.func @transform_7(%arg0: i32) -> (i32, i32) {
    %c0_i32 = arith.constant 0 : i32
    %c0_i32_0 = arith.constant 0 : i32
    return %arg0, %c0_i32 : i32, i32
  }
}

</mosaic_0001>

<llo_original>
// kernel: _policy_net_forward.1
$region0: #{_policy_net_forward.1}
  #allocation0 [shape = 'u32[]', space=smem, size = 0x4, offset = 0x4, fixed_abs, tag = 'smem constant byte address 0x4 - core index']
  #allocation1 [shape = 'u32[144,128]{1,0:T(1,128)}', space=vmem, size = 0x12000, scoped, tag = 'internal scratch']
  #allocation2 [shape = 'f32[8,128]{1,0:T(8,128)}', space=vmem, size = 0x1000, scoped, tag = 'scratch operand']
  %s0 = inlined_call_operand.hbm [shape: f32[8,16], index: 0, kind: input, shape index: {}]
  %s1 = inlined_call_operand.hbm [shape: bf16[128,128], index: 1, kind: input, shape index: {}]
  %s2 = inlined_call_operand.vmem [shape: f32[1,128], index: 2, kind: input, shape index: {}]
  %s3 = inlined_call_operand.hbm [shape: bf16[128,128], index: 3, kind: input, shape index: {}]
  %s4 = inlined_call_operand.vmem [shape: f32[1,128], index: 4, kind: input, shape index: {}]
  %s5 = inlined_call_operand.hbm [shape: bf16[128,128], index: 5, kind: input, shape index: {}]
  %s6 = inlined_call_operand.vmem [shape: f32[1,128], index: 6, kind: input, shape index: {}]
  %s7 = inlined_call_operand.vmem [shape: bf16[8,128], index: 7, kind: output, shape index: {}]
  %s8 = sld [smem:[#allocation0]]
  $region54: #{_policy_net_forward.1} parent=0
    _
  %s10 = ssub.s32 1, %s8
  %s11 = scalar_select 0, %s10, %s8
  $region1: #{_policy_net_forward.1} parent=0
    #allocation3 [shape = 'u8[4096]{0}', space=vmem, size = 0x1000, scoped, tag = 'input window, operand 0, single buffered']
    #allocation4 [shape = 's32[1]{0}', space=sflag, size = 0x4, scoped, tag = 'scoped memory for _policy_net_forward.1']
    #allocation5 [shape = 'u8[32768]{0}', space=vmem, size = 0x8000, scoped, tag = 'input window, operand 1, single buffered']
    #allocation6 [shape = 's32[1]{0}', space=sflag, size = 0x4, scoped, tag = 'scoped memory for _policy_net_forward.1']
    #allocation7 [shape = 'u8[32768]{0}', space=vmem, size = 0x8000, scoped, tag = 'input window, operand 3, single buffered']
    #allocation8 [shape = 'u8[32768]{0}', space=vmem, size = 0x8000, scoped, tag = 'input window, operand 5, single buffered']
    #allocation9 [shape = 's32[1]{0}', space=sflag, size = 0x4, scoped, tag = 'scoped memory for _policy_net_forward.1']
    %12 = vsyncpa [#allocation4], 0
    %13 = vsyncpa [#allocation6], 0
    %14 = vsyncpa [#allocation9], 0
    // Predicated region
    $region2: #{_policy_net_forward.1} parent=1 // pred_check
      _
    $region3: #{_policy_net_forward.1} parent=1 // pred_check_branch
      %16 = sbr.rel (0) target = $region5
    $region4: #{_policy_net_forward.1} parent=1 // pred_region
      %s18 = ssub.s32 128, 128
      %19 = vsyncadd [#allocation4], %s18
      %s21 = sshll.u32 [#allocation3], 4
      %s22 = int_to_ptr.vmem [resolvable:$true] %s21
      %24 = dma.hbm_to_vmem [thread:$0]  %s0, 128, %s22, [#allocation4]
    $region5: #{_policy_net_forward.1} parent=1 // pred_fallthru
      _
    // Predicated region
    $region6: #{_policy_net_forward.1} parent=1 // pred_check
      _
    $region7: #{_policy_net_forward.1} parent=1 // pred_check_branch
      %26 = sbr.rel (0) target = $region9
    $region8: #{_policy_net_forward.1} parent=1 // pred_region
      %s28 = ssub.s32 1024, 1024
      %29 = vsyncadd [#allocation6], %s28
      %s30 = sshll.u32 [#allocation5], 4
      %s31 = int_to_ptr.vmem [resolvable:$true] %s30
      %36 = dma.hbm_to_vmem [thread:$0]  %s1, 1024, %s31, [#allocation6], 64, 64, 4
    $region9: #{_policy_net_forward.1} parent=1 // pred_fallthru
      _
    // Predicated region
    $region10: #{_policy_net_forward.1} parent=1 // pred_check
      _
    $region11: #{_policy_net_forward.1} parent=1 // pred_check_branch
      %38 = sbr.rel (0) target = $region13
    $region12: #{_policy_net_forward.1} parent=1 // pred_region
      _
    $region13: #{_policy_net_forward.1} parent=1 // pred_fallthru
      _
    // Predicated region
    $region14: #{_policy_net_forward.1} parent=1 // pred_check
      _
    $region15: #{_policy_net_forward.1} parent=1 // pred_check_branch
      %40 = sbr.rel (0) target = $region17
    $region16: #{_policy_net_forward.1} parent=1 // pred_region
      %s42 = ssub.s32 1024, 1024
      %43 = vsyncadd [#allocation6], %s42
      %s44 = sshll.u32 [#allocation7], 4
      %s45 = int_to_ptr.vmem [resolvable:$true] %s44
      %50 = dma.hbm_to_vmem [thread:$0]  %s3, 1024, %s45, [#allocation6], 64, 64, 4
    $region17: #{_policy_net_forward.1} parent=1 // pred_fallthru
      _
    // Predicated region
    $region18: #{_policy_net_forward.1} parent=1 // pred_check
      _
    $region19: #{_policy_net_forward.1} parent=1 // pred_check_branch
      %52 = sbr.rel (0) target = $region21
    $region20: #{_policy_net_forward.1} parent=1 // pred_region
      _
    $region21: #{_policy_net_forward.1} parent=1 // pred_fallthru
      _
    // Predicated region
    $region22: #{_policy_net_forward.1} parent=1 // pred_check
      _
    $region23: #{_policy_net_forward.1} parent=1 // pred_check_branch
      %54 = sbr.rel (0) target = $region25
    $region24: #{_policy_net_forward.1} parent=1 // pred_region
      %s56 = ssub.s32 1024, 1024
      %57 = vsyncadd [#allocation9], %s56
      %s58 = sshll.u32 [#allocation8], 4
      %s59 = int_to_ptr.vmem [resolvable:$true] %s58
      %64 = dma.hbm_to_vmem [thread:$0]  %s5, 1024, %s59, [#allocation9], 64, 64, 4
    $region25: #{_policy_net_forward.1} parent=1 // pred_fallthru
      _
    // Predicated region
    $region26: #{_policy_net_forward.1} parent=1 // pred_check
      _
    $region27: #{_policy_net_forward.1} parent=1 // pred_check_branch
      %66 = sbr.rel (0) target = $region29
    $region28: #{_policy_net_forward.1} parent=1 // pred_region
      _
    $region29: #{_policy_net_forward.1} parent=1 // pred_fallthru
      _
    // Predicated region
    $region30: #{_policy_net_forward.1} parent=1 // pred_check
      _
    $region31: #{_policy_net_forward.1} parent=1 // pred_check_branch
      %68 = sbr.rel (0) target = $region33
    $region32: #{_policy_net_forward.1} parent=1 // pred_region
      %69 = dma.done [#allocation4], 128
    $region33: #{_policy_net_forward.1} parent=1 // pred_fallthru
      _
    // Predicated region
    $region34: #{_policy_net_forward.1} parent=1 // pred_check
      _
    $region35: #{_policy_net_forward.1} parent=1 // pred_check_branch
      %71 = sbr.rel (0) target = $region37
    $region36: #{_policy_net_forward.1} parent=1 // pred_region
      %72 = dma.done [#allocation6], 1024
    $region37: #{_policy_net_forward.1} parent=1 // pred_fallthru
      _
    // Predicated region
    $region38: #{_policy_net_forward.1} parent=1 // pred_check
      _
    $region39: #{_policy_net_forward.1} parent=1 // pred_check_branch
      %74 = sbr.rel (0) target = $region41
    $region40: #{_policy_net_forward.1} parent=1 // pred_region
      %75 = dma.done [#allocation6], 1024
    $region41: #{_policy_net_forward.1} parent=1 // pred_fallthru
      _
    // Predicated region
    $region42: #{_policy_net_forward.1} parent=1 // pred_check
      _
    $region43: #{_policy_net_forward.1} parent=1 // pred_check_branch
      %77 = sbr.rel (0) target = $region45
    $region44: #{_policy_net_forward.1} parent=1 // pred_region
      %78 = dma.done [#allocation9], 1024
    $region45: #{_policy_net_forward.1} parent=1 // pred_fallthru
      _
    %v80 = vld [vmem:[#allocation3] sm:$0xff]
    %vm81 = vcmask 130048
    %82 = vst.msk [vmem:[#allocation2] sm:$0xff] %vm81, %v80
    %vm83 = vcmask 1047680
    %84 = vst.msk [vmem:[#allocation2] sm:$0xff] %vm83, 0.0
    %v85 = vld [vmem:[#allocation2] sm:$0xff]
    %v86 = vpack.c.bf16 %v85, %v85
    %v87 = vld [vmem:[#allocation5] sm:$0xf]
    %v88 = vld [vmem:[#allocation5 + $0x4] sm:$0xf]
    %v89 = vld [vmem:[#allocation5 + $0x8] sm:$0xf]
    %v90 = vld [vmem:[#allocation5 + $0xc] sm:$0xf]
    %v91 = vld [vmem:[#allocation5 + $0x10] sm:$0xf]
    %v92 = vld [vmem:[#allocation5 + $0x14] sm:$0xf]
    %v93 = vld [vmem:[#allocation5 + $0x18] sm:$0xf]
    %v94 = vld [vmem:[#allocation5 + $0x1c] sm:$0xf]
    %v95 = vld [vmem:[#allocation5 + $0x20] sm:$0xf]
    %v96 = vld [vmem:[#allocation5 + $0x24] sm:$0xf]
    %v97 = vld [vmem:[#allocation5 + $0x28] sm:$0xf]
    %v98 = vld [vmem:[#allocation5 + $0x2c] sm:$0xf]
    %v99 = vld [vmem:[#allocation5 + $0x30] sm:$0xf]
    %v100 = vld [vmem:[#allocation5 + $0x34] sm:$0xf]
    %v101 = vld [vmem:[#allocation5 + $0x38] sm:$0xf]
    %v102 = vld [vmem:[#allocation5 + $0x3c] sm:$0xf]
    %v103 = vld [vmem:[%s2] sm:$0x1]
    %v105 = vlaneseq
    %v106 = vshrl.u32 %v105, 7
    %v107 = vsub.s32 0, %v106
    %v108 = vrot.slane %v103, %v107
    %v126 = vunpack.c.l.b16 %v87
    %v127 = vunpack.c.l.b16 %v88
    %v128 = vunpack.c.l.b16 %v89
    %v129 = vunpack.c.l.b16 %v90
    %v130 = vunpack.c.l.b16 %v91
    %v131 = vunpack.c.l.b16 %v92
    %v132 = vunpack.c.l.b16 %v93
    %v133 = vunpack.c.l.b16 %v94
    %v134 = vunpack.c.l.b16 %v95
    %v135 = vunpack.c.l.b16 %v96
    %v136 = vunpack.c.l.b16 %v97
    %v137 = vunpack.c.l.b16 %v98
    %v138 = vunpack.c.l.b16 %v99
    %v139 = vunpack.c.l.b16 %v100
    %v140 = vunpack.c.l.b16 %v101
    %v141 = vunpack.c.l.b16 %v102
    %v142 = vpack.c.b16 %v127, %v126
    %v143 = vpack.c.b16 %v129, %v128
    %v144 = vpack.c.b16 %v131, %v130
    %v145 = vpack.c.b16 %v133, %v132
    %v146 = vpack.c.b16 %v135, %v134
    %v147 = vpack.c.b16 %v137, %v136
    %v148 = vpack.c.b16 %v139, %v138
    %v149 = vpack.c.b16 %v141, %v140
    %158 = vmatprep.subr.bf16.mxu0 0
    %159 = vmatpush1.bf16.msra.mxu0 %v142
    %160 = vmatprep.subr.bf16.mxu0 0
    %161 = vmatpush1.bf16.msra.mxu0 %v143
    %162 = vmatprep.subr.bf16.mxu0 0
    %163 = vmatpush1.bf16.msra.mxu0 %v144
    %164 = vmatprep.subr.bf16.mxu0 0
    %165 = vmatpush1.bf16.msra.mxu0 %v145
    %166 = vmatprep.subr.bf16.mxu0 0
    %167 = vmatpush1.bf16.msra.mxu0 %v146
    %168 = vmatprep.subr.bf16.mxu0 0
    %169 = vmatpush1.bf16.msra.mxu0 %v147
    %170 = vmatprep.subr.bf16.mxu0 0
    %171 = vmatpush1.bf16.msra.mxu0 %v148
    %172 = vmatprep.subr.bf16.mxu0 0
    %173 = vmatpush1.bf16.msra.mxu0 %v149
    %174 = vmatprep.subr.bf16.mxu0 0
    %175 = vmatpush1.bf16.msra.mxu0 0
    %176 = vmatprep.subr.bf16.mxu0 0
    %177 = vmatpush1.bf16.msra.mxu0 0
    %178 = vmatprep.subr.bf16.mxu0 0
    %179 = vmatpush1.bf16.msra.mxu0 0
    %180 = vmatprep.subr.bf16.mxu0 0
    %181 = vmatpush1.bf16.msra.mxu0 0
    %182 = vmatprep.subr.bf16.mxu0 0
    %183 = vmatpush1.bf16.msra.mxu0 0
    %184 = vmatprep.subr.bf16.mxu0 0
    %185 = vmatpush1.bf16.msra.mxu0 0
    %186 = vmatprep.subr.bf16.mxu0 0
    %187 = vmatpush1.bf16.msra.mxu0 0
    %188 = vmatprep.subr.bf16.mxu0 0
    %189 = vmatpush1.bf16.msra.mxu0 0
    %190 = vmatprep.mubr.bf16.mxu0 0
    %191 = vmatmul.mubr.bf16.gmra.mrb[0].mxu0 %v86
    %v192 = vpop.f32.mrb[0].mxu0
    %v193 = vadd.f32 %v108, %v192
    %v194 = vpop.f32.mrb[0].mxu0
    %v195 = vpop.f32.mrb[0].mxu0
    %v196 = vpop.f32.mrb[0].mxu0
    %197 = vdwg.mxu0
    %v198 = vmax.f32 %v193, 0.0
    %v199 = vpack.c.bf16 %v198, %v198
    %v200 = vld [vmem:[#allocation7] sm:$0xf]
    %v201 = vld [vmem:[#allocation7 + $0x4] sm:$0xf]
    %v202 = vld [vmem:[#allocation7 + $0x8] sm:$0xf]
    %v203 = vld [vmem:[#allocation7 + $0xc] sm:$0xf]
    %v204 = vld [vmem:[#allocation7 + $0x10] sm:$0xf]
    %v205 = vld [vmem:[#allocation7 + $0x14] sm:$0xf]
    %v206 = vld [vmem:[#allocation7 + $0x18] sm:$0xf]
    %v207 = vld [vmem:[#allocation7 + $0x1c] sm:$0xf]
    %v208 = vld [vmem:[#allocation7 + $0x20] sm:$0xf]
    %v209 = vld [vmem:[#allocation7 + $0x24] sm:$0xf]
    %v210 = vld [vmem:[#allocation7 + $0x28] sm:$0xf]
    %v211 = vld [vmem:[#allocation7 + $0x2c] sm:$0xf]
    %v212 = vld [vmem:[#allocation7 + $0x30] sm:$0xf]
    %v213 = vld [vmem:[#allocation7 + $0x34] sm:$0xf]
    %v214 = vld [vmem:[#allocation7 + $0x38] sm:$0xf]
    %v215 = vld [vmem:[#allocation7 + $0x3c] sm:$0xf]
    %v216 = vld [vmem:[%s4] sm:$0x1]
    %v218 = vlaneseq
    %v219 = vshrl.u32 %v218, 7
    %v220 = vsub.s32 0, %v219
    %v221 = vrot.slane %v216, %v220
    %v239 = vunpack.c.l.b16 %v200
    %v240 = vunpack.c.l.b16 %v201
    %v241 = vunpack.c.l.b16 %v202
    %v242 = vunpack.c.l.b16 %v203
    %v243 = vunpack.c.l.b16 %v204
    %v244 = vunpack.c.l.b16 %v205
    %v245 = vunpack.c.l.b16 %v206
    %v246 = vunpack.c.l.b16 %v207
    %v247 = vunpack.c.l.b16 %v208
    %v248 = vunpack.c.l.b16 %v209
    %v249 = vunpack.c.l.b16 %v210
    %v250 = vunpack.c.l.b16 %v211
    %v251 = vunpack.c.l.b16 %v212
    %v252 = vunpack.c.l.b16 %v213
    %v253 = vunpack.c.l.b16 %v214
    %v254 = vunpack.c.l.b16 %v215
    %v255 = vpack.c.b16 %v240, %v239
    %v256 = vpack.c.b16 %v242, %v241
    %v257 = vpack.c.b16 %v244, %v243
    %v258 = vpack.c.b16 %v246, %v245
    %v259 = vpack.c.b16 %v248, %v247
    %v260 = vpack.c.b16 %v250, %v249
    %v261 = vpack.c.b16 %v252, %v251
    %v262 = vpack.c.b16 %v254, %v253
    %271 = vmatprep.subr.bf16.mxu0 0
    %272 = vmatpush1.bf16.msra.mxu0 %v255
    %273 = vmatprep.subr.bf16.mxu0 0
    %274 = vmatpush1.bf16.msra.mxu0 %v256
    %275 = vmatprep.subr.bf16.mxu0 0
    %276 = vmatpush1.bf16.msra.mxu0 %v257
    %277 = vmatprep.subr.bf16.mxu0 0
    %278 = vmatpush1.bf16.msra.mxu0 %v258
    %279 = vmatprep.subr.bf16.mxu0 0
    %280 = vmatpush1.bf16.msra.mxu0 %v259
    %281 = vmatprep.subr.bf16.mxu0 0
    %282 = vmatpush1.bf16.msra.mxu0 %v260
    %283 = vmatprep.subr.bf16.mxu0 0
    %284 = vmatpush1.bf16.msra.mxu0 %v261
    %285 = vmatprep.subr.bf16.mxu0 0
    %286 = vmatpush1.bf16.msra.mxu0 %v262
    %287 = vmatprep.subr.bf16.mxu0 0
    %288 = vmatpush1.bf16.msra.mxu0 0
    %289 = vmatprep.subr.bf16.mxu0 0
    %290 = vmatpush1.bf16.msra.mxu0 0
    %291 = vmatprep.subr.bf16.mxu0 0
    %292 = vmatpush1.bf16.msra.mxu0 0
    %293 = vmatprep.subr.bf16.mxu0 0
    %294 = vmatpush1.bf16.msra.mxu0 0
    %295 = vmatprep.subr.bf16.mxu0 0
    %296 = vmatpush1.bf16.msra.mxu0 0
    %297 = vmatprep.subr.bf16.mxu0 0
    %298 = vmatpush1.bf16.msra.mxu0 0
    %299 = vmatprep.subr.bf16.mxu0 0
    %300 = vmatpush1.bf16.msra.mxu0 0
    %301 = vmatprep.subr.bf16.mxu0 0
    %302 = vmatpush1.bf16.msra.mxu0 0
    %303 = vmatprep.mubr.bf16.mxu0 0
    %304 = vmatmul.mubr.bf16.gmra.mrb[0].mxu0 %v199
    %v305 = vpop.f32.mrb[0].mxu0
    %v306 = vadd.f32 %v221, %v305
    %v307 = vpop.f32.mrb[0].mxu0
    %v308 = vpop.f32.mrb[0].mxu0
    %v309 = vpop.f32.mrb[0].mxu0
    %310 = vdwg.mxu0
    %v311 = vmax.f32 %v306, 0.0
    %v312 = vpack.c.bf16 %v311, %v311
    %v313 = vld [vmem:[#allocation8] sm:$0xf]
    %v314 = vld [vmem:[#allocation8 + $0x4] sm:$0xf]
    %v315 = vld [vmem:[#allocation8 + $0x8] sm:$0xf]
    %v316 = vld [vmem:[#allocation8 + $0xc] sm:$0xf]
    %v317 = vld [vmem:[#allocation8 + $0x10] sm:$0xf]
    %v318 = vld [vmem:[#allocation8 + $0x14] sm:$0xf]
    %v319 = vld [vmem:[#allocation8 + $0x18] sm:$0xf]
    %v320 = vld [vmem:[#allocation8 + $0x1c] sm:$0xf]
    %v321 = vld [vmem:[#allocation8 + $0x20] sm:$0xf]
    %v322 = vld [vmem:[#allocation8 + $0x24] sm:$0xf]
    %v323 = vld [vmem:[#allocation8 + $0x28] sm:$0xf]
    %v324 = vld [vmem:[#allocation8 + $0x2c] sm:$0xf]
    %v325 = vld [vmem:[#allocation8 + $0x30] sm:$0xf]
    %v326 = vld [vmem:[#allocation8 + $0x34] sm:$0xf]
    %v327 = vld [vmem:[#allocation8 + $0x38] sm:$0xf]
    %v328 = vld [vmem:[#allocation8 + $0x3c] sm:$0xf]
    %v329 = vld [vmem:[%s6] sm:$0x1]
    %v331 = vlaneseq
    %v332 = vshrl.u32 %v331, 7
    %v333 = vsub.s32 0, %v332
    %v334 = vrot.slane %v329, %v333
    %v352 = vunpack.c.l.b16 %v313
    %v353 = vunpack.c.l.b16 %v314
    %v354 = vunpack.c.l.b16 %v315
    %v355 = vunpack.c.l.b16 %v316
    %v356 = vunpack.c.l.b16 %v317
    %v357 = vunpack.c.l.b16 %v318
    %v358 = vunpack.c.l.b16 %v319
    %v359 = vunpack.c.l.b16 %v320
    %v360 = vunpack.c.l.b16 %v321
    %v361 = vunpack.c.l.b16 %v322
    %v362 = vunpack.c.l.b16 %v323
    %v363 = vunpack.c.l.b16 %v324
    %v364 = vunpack.c.l.b16 %v325
    %v365 = vunpack.c.l.b16 %v326
    %v366 = vunpack.c.l.b16 %v327
    %v367 = vunpack.c.l.b16 %v328
    %v368 = vpack.c.b16 %v353, %v352
    %v369 = vpack.c.b16 %v355, %v354
    %v370 = vpack.c.b16 %v357, %v356
    %v371 = vpack.c.b16 %v359, %v358
    %v372 = vpack.c.b16 %v361, %v360
    %v373 = vpack.c.b16 %v363, %v362
    %v374 = vpack.c.b16 %v365, %v364
    %v375 = vpack.c.b16 %v367, %v366
    %384 = vmatprep.subr.bf16.mxu0 0
    %385 = vmatpush1.bf16.msra.mxu0 %v368
    %386 = vmatprep.subr.bf16.mxu0 0
    %387 = vmatpush1.bf16.msra.mxu0 %v369
    %388 = vmatprep.subr.bf16.mxu0 0
    %389 = vmatpush1.bf16.msra.mxu0 %v370
    %390 = vmatprep.subr.bf16.mxu0 0
    %391 = vmatpush1.bf16.msra.mxu0 %v371
    %392 = vmatprep.subr.bf16.mxu0 0
    %393 = vmatpush1.bf16.msra.mxu0 %v372
    %394 = vmatprep.subr.bf16.mxu0 0
    %395 = vmatpush1.bf16.msra.mxu0 %v373
    %396 = vmatprep.subr.bf16.mxu0 0
    %397 = vmatpush1.bf16.msra.mxu0 %v374
    %398 = vmatprep.subr.bf16.mxu0 0
    %399 = vmatpush1.bf16.msra.mxu0 %v375
    %400 = vmatprep.subr.bf16.mxu0 0
    %401 = vmatpush1.bf16.msra.mxu0 0
    %402 = vmatprep.subr.bf16.mxu0 0
    %403 = vmatpush1.bf16.msra.mxu0 0
    %404 = vmatprep.subr.bf16.mxu0 0
    %405 = vmatpush1.bf16.msra.mxu0 0
    %406 = vmatprep.subr.bf16.mxu0 0
    %407 = vmatpush1.bf16.msra.mxu0 0
    %408 = vmatprep.subr.bf16.mxu0 0
    %409 = vmatpush1.bf16.msra.mxu0 0
    %410 = vmatprep.subr.bf16.mxu0 0
    %411 = vmatpush1.bf16.msra.mxu0 0
    %412 = vmatprep.subr.bf16.mxu0 0
    %413 = vmatpush1.bf16.msra.mxu0 0
    %414 = vmatprep.subr.bf16.mxu0 0
    %415 = vmatpush1.bf16.msra.mxu0 0
    %416 = vmatprep.mubr.bf16.mxu0 0
    %417 = vmatmul.mubr.bf16.gmra.mrb[0].mxu0 %v312
    %v418 = vpop.f32.mrb[0].mxu0
    %v419 = vadd.f32 %v334, %v418
    %v420 = vpop.f32.mrb[0].mxu0
    %v421 = vpop.f32.mrb[0].mxu0
    %v422 = vpop.f32.mrb[0].mxu0
    %423 = vdwg.mxu0
    %v424 = vpack.c.bf16 %v419, %v419
    %425 = vst [vmem:[%s7] sm:$0xf] %v424
    // Predicated region
    $region46: #{_policy_net_forward.1} parent=1 // pred_check
      _
    $region47: #{_policy_net_forward.1} parent=1 // pred_check_branch
      %427 = sbr.rel (0) target = $region49
    $region48: #{_policy_net_forward.1} parent=1 // pred_region
      _
    $region49: #{_policy_net_forward.1} parent=1 // pred_fallthru
      _
    // Predicated region
    $region50: #{_policy_net_forward.1} parent=1 // pred_check
      _
    $region51: #{_policy_net_forward.1} parent=1 // pred_check_branch
      %429 = sbr.rel (0) target = $region53
    $region52: #{_policy_net_forward.1} parent=1 // pred_region
      _
    $region53: #{_policy_net_forward.1} parent=1 // pred_fallthru
      _
    %430 = vsyncpa [#allocation4], 1
    %431 = vsyncpa [#allocation6], 1
    %432 = vsyncpa [#allocation9], 1

</llo_original>
